<compile_context>
chip_gen: v6e
topology: v6e:2x2x1
jax: 0.10.0
libtpu: 0.0.40
codegen_flags: <defaults>
</compile_context>

<pallas_src>
import jax
import jax.numpy as jnp
import numpy as np
from jax.experimental import pallas as pl
from jax.experimental.pallas import tpu as pltpu


_H_CHUNK = 512                       # lane-chunk for the H contraction (multiple of 128)
_ENC_BUF_BYTES = 6 * 1024 * 1024     # target bytes per enc buffer (x2 double-buffered)


def _bahdanau_kernel(w2v_ref, const_ref, enc_ref, out_ref, scores_ref):
    # w2v_ref:    (1, H)            v @ W2   (grid-invariant, tiny)
    # const_ref:  (TB, 1)           per-batch S-invariant score term
    # enc_ref:    (tS, TB, H)       encoder-outputs tile, native (S, B, H) layout/dtype
    # out_ref:    (TB, S)           attention weights (batch-major, lane-dense)
    # scores_ref: (S_pad, TB) f32   VMEM-resident scores, filled across the S grid axis
    j = pl.program_id(1)
    tS, TB, H = enc_ref.shape
    S_pad = scores_ref.shape[0]
    S = out_ref.shape[1]

    # Per-tile mat-vec: scores[s, b] = sum_h enc[s, b, h] * w2v[h].
    # H is contracted in lane chunks so the elementwise product never
    # materializes a tile-sized temporary (keeps vreg pressure low).
    acc = jnp.zeros((tS, TB), jnp.float32)
    for c0 in range(0, H, _H_CHUNK):                      # static, unrolled
        csz = min(_H_CHUNK, H - c0)
        e = enc_ref[:, :, pl.ds(c0, csz)].astype(jnp.float32)   # upcast after DMA
        w = w2v_ref[:, pl.ds(c0, csz)].astype(jnp.float32)      # (1, csz)
        acc = acc + jnp.sum(e * w[None, :, :], axis=-1)

    scores_ref[pl.ds(j * tS, tS), :] = acc

    # Softmax epilogue on the last S step; the scores block stayed VMEM-resident.
    @pl.when(j == pl.num_programs(1) - 1)
    def _():
        sc = jnp.transpose(scores_ref[...])               # (TB, S_pad) — one XLU transpose
        sc = sc + const_ref[...]                          # S-invariant term (score parity)
        if S_pad > S:                                     # static: mask padded tail rows
            col = jax.lax.broadcasted_iota(jnp.int32, (TB, S_pad), 1)
            sc = jnp.where(col < S, sc, -jnp.inf)
        m = jnp.max(sc, axis=-1, keepdims=True)
        e = jnp.exp(sc - m)
        l = jnp.sum(e, axis=-1, keepdims=True)
        p = e * pl.reciprocal(l, approx=True)             # divide on the EUP slot
        out_ref[...] = p[:, :S].astype(out_ref.dtype)


def _round_up(x, m):
    return (x + m - 1) // m * m


def _pick_tiles(B, S, H, itemsize):
    # Batch tile: 128 lanes when B allows several blocks; otherwise the full batch.
    if B % 128 == 0 and B > 128:
        tb = 128
    else:
        tb = B
    # TODO(synk): on v7x (2 TensorCores) with B <= 128 there is only one parallel
    # batch block; splitting S across cores would require a cross-core softmax merge.
    #
    # Sequence tile: biggest tile keeping the double-buffered enc slab around
    # ~12 MiB of VMEM (safe for v7x's 64 MiB physical and v5e's 16 MiB scoped default),
    # accounting for sublane (8) / lane (128) padding of the (TB, H) minor dims.
    row_bytes = _round_up(tb, 8) * _round_up(H, 128) * itemsize
    ts = max(1, _ENC_BUF_BYTES // row_bytes)
    if ts >= S:
        ts = S
    else:
        ts = max(8, (ts // 8) * 8)
    return tb, ts


def bahdanau_attention(hidden, encoder_outputs, params):
    """hidden: (B, H), encoder_outputs: (S, B, H) -> attention weights (B, S)."""
    B, H = hidden.shape
    S = encoder_outputs.shape[0]

    w1, b1 = params["w1"], params["b1"]
    w2, b2 = params["w2"], params["b2"]
    vw, vb = params["v_w"][0], params["v_b"][0]

    # Hoisted algebra (exact up to fp reassociation):
    #   score[b,s] = tanh(h_b W1^T + b1)·v + (e_{s,b} W2^T + b2)·v + v_b
    #              = e_{s,b} · (v @ W2)  +  const_b
    f32 = jnp.float32
    w2v = (vw.astype(f32) @ w2.astype(f32)).reshape(1, H)                      # (1, H)
    const = (jnp.tanh(hidden.astype(f32) @ w1.astype(f32).T + b1) @ vw
             + b2 @ vw + vb)                                                   # (B,)
    const = const.reshape(B, 1).astype(f32)

    tb, ts = _pick_tiles(B, S, H, jnp.dtype(encoder_outputs.dtype).itemsize)
    n_b = B // tb
    n_s = pl.cdiv(S, ts)
    s_pad = n_s * ts

    # TODO(synk): for extremely long sequences the (S, TB) scores scratch itself
    # would need an online softmax; not needed at realistic S (scores are 1/H of enc).
    out = pl.pallas_call(
        _bahdanau_kernel,
        out_shape=jax.ShapeDtypeStruct((B, S), jnp.float32),
        grid_spec=pltpu.PrefetchScalarGridSpec(
            num_scalar_prefetch=0,
            grid=(n_b, n_s),
            in_specs=[
                pl.BlockSpec((1, H), lambda i, j: (0, 0)),            # v @ W2 (invariant)
                pl.BlockSpec((tb, 1), lambda i, j: (i, 0)),           # per-batch const
                pl.BlockSpec((ts, tb, H), lambda i, j: (j, i, 0)),    # encoder (native layout/dtype)
            ],
            out_specs=pl.BlockSpec((tb, S), lambda i, j: (i, 0)),     # batch-major, S-resident
            scratch_shapes=[pltpu.VMEM((s_pad, tb), jnp.float32)],
        ),
        compiler_params=pltpu.CompilerParams(
            dimension_semantics=("parallel", "arbitrary"),
            vmem_limit_bytes=48 * 1024 * 1024,   # headroom; still < v7x 64 MiB physical
        ),
    )(w2v, const, encoder_outputs)
    return out


def bahdanau_reference(hidden, encoder_outputs, params):
    """Pure-JAX reference mirroring the PyTorch forward exactly."""
    S = encoder_outputs.shape[0]
    h = jnp.repeat(hidden[:, None, :], S, axis=1)                 # (B, S, H)
    enc = jnp.transpose(encoder_outputs, (1, 0, 2))               # (B, S, H)
    scores = (jnp.tanh(h @ params["w1"].T + params["b1"])
              + (enc @ params["w2"].T + params["b2"])) @ params["v_w"].T + params["v_b"]
    return jax.nn.softmax(scores[..., 0], axis=-1)


if __name__ == "__main__":
    B, S, H = 2, 8, 32
    key = jax.random.PRNGKey(0)
    ks = jax.random.split(key, 8)
    bound = 1.0 / np.sqrt(H)   # PyTorch nn.Linear default init range
    params = {
        "w1": jax.random.uniform(ks[0], (H, H), jnp.float32, -bound, bound),
        "b1": jax.random.uniform(ks[1], (H,), jnp.float32, -bound, bound),
        "w2": jax.random.uniform(ks[2], (H, H), jnp.float32, -bound, bound),
        "b2": jax.random.uniform(ks[3], (H,), jnp.float32, -bound, bound),
        "v_w": jax.random.uniform(ks[4], (1, H), jnp.float32, -bound, bound),
        "v_b": jax.random.uniform(ks[5], (1,), jnp.float32, -bound, bound),
    }
    hidden = jax.random.normal(ks[6], (B, H), jnp.float32)
    encoder_outputs = jax.random.normal(ks[7], (S, B, H), jnp.float32)

    out = bahdanau_attention(hidden, encoder_outputs, params)
    out = jax.block_until_ready(out)

    ref = bahdanau_reference(hidden, encoder_outputs, params)
    assert out.shape == (B, S)
    # Tolerance relaxed vs 1e-5: the approx EUP reciprocal in the softmax
    # epilogue plus the hoisted-algebra reassociation introduce ~1e-4-level
    # differences; post-softmax values are still matched to 1e-3.
    np.testing.assert_allclose(np.asarray(out), np.asarray(ref), atol=1e-3, rtol=1e-3)
    print("KERNEL_OK")
</pallas_src>

<mosaic_0001>
module attributes {stable_mosaic.version = 11 : i64} {
  func.func @_bahdanau_kernel(%arg0: i32, %arg1: i32, %arg2: memref<1x32xf32, #tpu.memory_space<vmem>>, %arg3: memref<2x1xf32, #tpu.memory_space<vmem>>, %arg4: memref<8x2x32xf32, #tpu.memory_space<vmem>>, %arg5: memref<2x8xf32, #tpu.memory_space<vmem>>, %arg6: memref<8x2xf32, #tpu.memory_space<vmem>>) attributes {dimension_semantics = [#tpu.dimension_semantics<parallel>, #tpu.dimension_semantics<arbitrary>], iteration_bounds = array<i64: 1, 1>, scalar_prefetch = 0 : i64, scratch_operands = 1 : i64, tpu.core_type = #tpu.core_type<tc>, window_params = [{pipeline_mode = #tpu.pipeline_mode<synchronous>, transform_indices = @transform_0, window_bounds = array<i64: 1, 32>}, {transform_indices = @transform_1, window_bounds = array<i64: 2, 1>}, {transform_indices = @transform_2, window_bounds = array<i64: 8, 2, 32>}, {transform_indices = @transform_3, window_bounds = array<i64: 2, 8>}]} {
    %cst = arith.constant 0.000000e+00 : f32
    %0 = vector.broadcast %cst : f32 to vector<8x2xf32>
    %c0 = arith.constant 0 : index
    %c0_0 = arith.constant 0 : index
    %c0_1 = arith.constant 0 : index
    %1 = vector.load %arg4[%c0, %c0_0, %c0_1] : memref<8x2x32xf32, #tpu.memory_space<vmem>>, vector<8x2x32xf32>
    %c0_2 = arith.constant 0 : index
    %c0_3 = arith.constant 0 : index
    %2 = vector.load %arg2[%c0_2, %c0_3] : memref<1x32xf32, #tpu.memory_space<vmem>>, vector<1x32xf32>
    %3 = vector.shape_cast %2 : vector<1x32xf32> to vector<1x1x32xf32>
    %4 = vector.broadcast %3 : vector<1x1x32xf32> to vector<8x2x32xf32>
    %5 = arith.mulf %1, %4 : vector<8x2x32xf32>
    %cst_4 = arith.constant dense<0.000000e+00> : vector<8x2xf32>
    %6 = vector.multi_reduction <add>, %5, %cst_4 [2] : vector<8x2x32xf32> to vector<8x2xf32>
    %7 = arith.addf %0, %6 : vector<8x2xf32>
    %c8_i32 = arith.constant 8 : i32
    %8 = arith.muli %arg1, %c8_i32 : i32
    %9 = arith.index_cast %8 : i32 to index
    %c0_5 = arith.constant 0 : index
    %10 = vector.load %arg6[%9, %c0_5] : memref<8x2xf32, #tpu.memory_space<vmem>>, vector<8x2xf32>
    tpu.vector_store %arg6[%9, %c0_5], %7 {strides = array<i32>} : memref<8x2xf32, #tpu.memory_space<vmem>>, vector<8x2xf32>,
    %c0_i32 = arith.constant 0 : i32
    %11 = arith.cmpi eq, %arg1, %c0_i32 : i32
    %12 = arith.extui %11 : i1 to i32
    %c0_i32_6 = arith.constant 0 : i32
    %13 = arith.cmpi ne, %12, %c0_i32_6 : i32
    scf.if %13 {
      %c0_7 = arith.constant 0 : index
      %c0_8 = arith.constant 0 : index
      %14 = vector.load %arg6[%c0_7, %c0_8] : memref<8x2xf32, #tpu.memory_space<vmem>>, vector<8x2xf32>
      %15 = tpu.transpose %14, [1, 0] : vector<8x2xf32> -> vector<2x8xf32>
      %c0_9 = arith.constant 0 : index
      %c0_10 = arith.constant 0 : index
      %16 = vector.load %arg3[%c0_9, %c0_10] : memref<2x1xf32, #tpu.memory_space<vmem>>, vector<2x1xf32>
      %17 = vector.broadcast %16 : vector<2x1xf32> to vector<2x8xf32>
      %18 = arith.addf %15, %17 : vector<2x8xf32>
      %cst_11 = arith.constant dense<0xFF800000> : vector<2xf32>
      %19 = vector.multi_reduction <maximumf>, %18, %cst_11 [1] : vector<2x8xf32> to vector<2xf32>
      %20 = vector.shape_cast %19 : vector<2xf32> to vector<2x1xf32>
      %21 = vector.broadcast %20 : vector<2x1xf32> to vector<2x8xf32>
      %22 = arith.subf %18, %21 : vector<2x8xf32>
      %23 = math.exp %22 : vector<2x8xf32>
      %cst_12 = arith.constant dense<0.000000e+00> : vector<2xf32>
      %24 = vector.multi_reduction <add>, %23, %cst_12 [1] : vector<2x8xf32> to vector<2xf32>
      %25 = vector.shape_cast %24 : vector<2xf32> to vector<2x1xf32>
      %26 = tpu.reciprocal %25 {approx = true} : vector<2x1xf32> -> vector<2x1xf32>
      %27 = vector.broadcast %26 : vector<2x1xf32> to vector<2x8xf32>
      %28 = arith.mulf %23, %27 : vector<2x8xf32>
      %c0_13 = arith.constant 0 : index
      %c0_14 = arith.constant 0 : index
      %29 = vector.load %arg5[%c0_13, %c0_14] : memref<2x8xf32, #tpu.memory_space<vmem>>, vector<2x8xf32>
      tpu.vector_store %arg5[%c0_13, %c0_14], %28 {strides = array<i32>} : memref<2x8xf32, #tpu.memory_space<vmem>>, vector<2x8xf32>,
    } else {
    }
    return
  }
  func.func @transform_0(%arg0: i32, %arg1: i32) -> (i32, i32) {
    %c0_i32 = arith.constant 0 : i32
    %c0_i32_0 = arith.constant 0 : i32
    %c0_i32_1 = arith.constant 0 : i32
    return %c0_i32, %c0_i32_0 : i32, i32
  }
  func.func @transform_1(%arg0: i32, %arg1: i32) -> (i32, i32) {
    %c0_i32 = arith.constant 0 : i32
    %c0_i32_0 = arith.constant 0 : i32
    return %arg0, %c0_i32 : i32, i32
  }
  func.func @transform_2(%arg0: i32, %arg1: i32) -> (i32, i32, i32) {
    %c0_i32 = arith.constant 0 : i32
    %c0_i32_0 = arith.constant 0 : i32
    return %arg1, %arg0, %c0_i32 : i32, i32, i32
  }
  func.func @transform_3(%arg0: i32, %arg1: i32) -> (i32, i32) {
    %c0_i32 = arith.constant 0 : i32
    %c0_i32_0 = arith.constant 0 : i32
    return %arg0, %c0_i32 : i32, i32
  }
}

</mosaic_0001>

<llo_original>
// kernel: tpu_custom_call.1
$region0: #{tpu_custom_call.1}
  #allocation0 [shape = 'u32[]', space=smem, size = 0x4, offset = 0x4, fixed_abs, tag = 'smem constant byte address 0x4 - core index']
  #allocation1 [shape = 'u32[144,128]{1,0:T(1,128)}', space=vmem, size = 0x12000, scoped, tag = 'internal scratch']
  #allocation2 [shape = 'f32[8,2]{1,0:T(8,128)}', space=vmem, size = 0x1000, scoped, tag = 'scratch operand']
  %s0 = inlined_call_operand.vmem [shape: f32[1,32], index: 0, kind: input, shape index: {}]
  %s1 = inlined_call_operand.vmem [shape: f32[2,1], index: 1, kind: input, shape index: {}]
  %s2 = inlined_call_operand.hbm [shape: f32[8,2,32], index: 2, kind: input, shape index: {}]
  %s3 = inlined_call_operand.hbm [shape: f32[2,8], index: 3, kind: output, shape index: {}]
  %s4 = sld [smem:[#allocation0]]
  $region30: #{tpu_custom_call.1} parent=0
    _
  %s6 = ssub.s32 1, %s4
  %s7 = scalar_select 0, %s6, %s4
  $region1: #{tpu_custom_call.1} parent=0
    #allocation3 [shape = 'u8[8192]{0}', space=vmem, size = 0x2000, scoped, tag = 'input window, operand 2, single buffered']
    #allocation4 [shape = 's32[1]{0}', space=sflag, size = 0x4, scoped, tag = 'scoped memory for tpu_custom_call.1']
    #allocation5 [shape = 's32[1]{0}', space=sflag, size = 0x4, scoped, tag = 'scoped memory for tpu_custom_call.1']
    #allocation6 [shape = 'u8[1024]{0}', space=vmem, size = 0x400, scoped, tag = 'output window, operand 0, single buffered']
    %8 = vsyncpa [#allocation4], 0
    %9 = vsyncpa [#allocation5], 0
    // Predicated region
    $region2: #{tpu_custom_call.1} parent=1 // pred_check
      _
    $region3: #{tpu_custom_call.1} parent=1 // pred_check_branch
      %11 = sbr.rel (0) target = $region5
    $region4: #{tpu_custom_call.1} parent=1 // pred_region
      _
    $region5: #{tpu_custom_call.1} parent=1 // pred_fallthru
      _
    // Predicated region
    $region6: #{tpu_custom_call.1} parent=1 // pred_check
      _
    $region7: #{tpu_custom_call.1} parent=1 // pred_check_branch
      %13 = sbr.rel (0) target = $region9
    $region8: #{tpu_custom_call.1} parent=1 // pred_region
      _
    $region9: #{tpu_custom_call.1} parent=1 // pred_fallthru
      _
    // Predicated region
    $region10: #{tpu_custom_call.1} parent=1 // pred_check
      _
    $region11: #{tpu_custom_call.1} parent=1 // pred_check_branch
      %15 = sbr.rel (0) target = $region13
    $region12: #{tpu_custom_call.1} parent=1 // pred_region
      %s17 = ssub.s32 256, 256
      %18 = vsyncadd [#allocation4], %s17
      %s19 = sshll.u32 [#allocation3], 4
      %s20 = int_to_ptr.vmem [resolvable:$true] %s19
      %25 = dma.hbm_to_vmem [thread:$0]  %s2, 256, %s20, [#allocation4], 32, 32, 2
    $region13: #{tpu_custom_call.1} parent=1 // pred_fallthru
      _
    // Predicated region
    $region14: #{tpu_custom_call.1} parent=1 // pred_check
      _
    $region15: #{tpu_custom_call.1} parent=1 // pred_check_branch
      %27 = sbr.rel (0) target = $region17
    $region16: #{tpu_custom_call.1} parent=1 // pred_region
      %28 = dma.done [#allocation4], 256
    $region17: #{tpu_custom_call.1} parent=1 // pred_fallthru
      _
    %v29 = vld [vmem:[#allocation3] sm:$0x3]
    %v30 = vld [vmem:[#allocation3 + $0x2] sm:$0x3]
    %v31 = vld [vmem:[#allocation3 + $0x4] sm:$0x3]
    %v32 = vld [vmem:[#allocation3 + $0x6] sm:$0x3]
    %v33 = vld [vmem:[#allocation3 + $0x8] sm:$0x3]
    %v34 = vld [vmem:[#allocation3 + $0xa] sm:$0x3]
    %v35 = vld [vmem:[#allocation3 + $0xc] sm:$0x3]
    %v36 = vld [vmem:[#allocation3 + $0xe] sm:$0x3]
    %v37 = vld [vmem:[%s0] sm:$0x1]
    %v39 = vlaneseq
    %v40 = vshrl.u32 %v39, 7
    %v41 = vsub.s32 0, %v40
    %v42 = vrot.slane %v37, %v41
    %v44 = vmul.f32 %v29, %v42
    %v45 = vmul.f32 %v30, %v42
    %v46 = vmul.f32 %v31, %v42
    %v47 = vmul.f32 %v32, %v42
    %v48 = vmul.f32 %v33, %v42
    %v49 = vmul.f32 %v34, %v42
    %v50 = vmul.f32 %v35, %v42
    %v51 = vmul.f32 %v36, %v42
    %vm52 = vcmask 254976
    %v53 = vsel %vm52, %v44, 0.0
    %54 = vadd.xlane.f32.xlu0 %v53
    %v55 = vpop.xlane.xlu0 %54
    %v56 = vsel %vm52, %v45, 0.0
    %57 = vadd.xlane.f32.xlu0 %v56
    %v58 = vpop.xlane.xlu0 %57
    %v59 = vsel %vm52, %v46, 0.0
    %60 = vadd.xlane.f32.xlu0 %v59
    %v61 = vpop.xlane.xlu0 %60
    %v62 = vsel %vm52, %v47, 0.0
    %63 = vadd.xlane.f32.xlu0 %v62
    %v64 = vpop.xlane.xlu0 %63
    %v65 = vsel %vm52, %v48, 0.0
    %66 = vadd.xlane.f32.xlu0 %v65
    %v67 = vpop.xlane.xlu0 %66
    %v68 = vsel %vm52, %v49, 0.0
    %69 = vadd.xlane.f32.xlu0 %v68
    %v70 = vpop.xlane.xlu0 %69
    %v71 = vsel %vm52, %v50, 0.0
    %72 = vadd.xlane.f32.xlu0 %v71
    %v73 = vpop.xlane.xlu0 %72
    %v74 = vsel %vm52, %v51, 0.0
    %75 = vadd.xlane.f32.xlu0 %v74
    %v76 = vpop.xlane.xlu0 %75
    %v77 = vadd.f32 %v55, 0.0
    %v78 = vadd.f32 %v58, 0.0
    %v79 = vadd.f32 %v61, 0.0
    %v80 = vadd.f32 %v64, 0.0
    %v81 = vadd.f32 %v67, 0.0
    %v82 = vadd.f32 %v70, 0.0
    %v83 = vadd.f32 %v73, 0.0
    %v84 = vadd.f32 %v76, 0.0
    %s85 = smul.u32 0, 8
    %v94 = vlaneseq
    %v95 = vand.u32 %v94, 127
    %v96 = vlaneseq
    %v97 = vshrl.u32 %v96, 7
    %v98 = vsub.s32 %v95, %v97
    %v99 = vrot.slane %v77, %v98
    %v100 = vlaneseq
    %v101 = vshrl.u32 %v100, 7
    %v102 = vsub.s32 %v95, %v101
    %v103 = vrot.slane %v78, %v102
    %v104 = vlaneseq
    %v105 = vshrl.u32 %v104, 7
    %v106 = vsub.s32 %v95, %v105
    %v107 = vrot.slane %v79, %v106
    %v108 = vlaneseq
    %v109 = vshrl.u32 %v108, 7
    %v110 = vsub.s32 %v95, %v109
    %v111 = vrot.slane %v80, %v110
    %v112 = vlaneseq
    %v113 = vshrl.u32 %v112, 7
    %v114 = vsub.s32 %v95, %v113
    %v115 = vrot.slane %v81, %v114
    %v116 = vlaneseq
    %v117 = vshrl.u32 %v116, 7
    %v118 = vsub.s32 %v95, %v117
    %v119 = vrot.slane %v82, %v118
    %v120 = vlaneseq
    %v121 = vshrl.u32 %v120, 7
    %v122 = vsub.s32 %v95, %v121
    %v123 = vrot.slane %v83, %v122
    %v124 = vlaneseq
    %v125 = vshrl.u32 %v124, 7
    %v126 = vsub.s32 %v95, %v125
    %v127 = vrot.slane %v84, %v126
    %vm128 = vcmask 1041409
    %v129 = vsel %vm128, %v103, %v99
    %vm130 = vcmask 1042434
    %v131 = vsel %vm130, %v107, %v129
    %vm132 = vcmask 1043459
    %v133 = vsel %vm132, %v111, %v131
    %vm134 = vcmask 1044484
    %v135 = vsel %vm134, %v115, %v133
    %vm136 = vcmask 1045509
    %v137 = vsel %vm136, %v119, %v135
    %vm138 = vcmask 1046534
    %v139 = vsel %vm138, %v123, %v137
    %vm140 = vcmask 1047559
    %v141 = vsel %vm140, %v127, %v139
    %s143 = scalar_lea.vmem [#allocation2], %s85
    %vm144 = vcmask 15360
    %145 = vst.msk [vmem:[%s143] sm:$0xff] %vm144, %v141
    %p146 = scmp.eq.s32.totalorder 0, 0
    // Predicated region
    $region18: #{tpu_custom_call.1} parent=1 // pred_check
      %p147 = pneg %p146
    $region19: #{tpu_custom_call.1} parent=1 // pred_check_branch
      %149 = sbr.rel (%p147) target = $region21
    $region20: #{tpu_custom_call.1} parent=1 // pred_region
      %v150 = vld [vmem:[#allocation2] sm:$0xff]
      %151 = vxpose.xlu0.b32.start [1/16] %v150, 128
      %152 = vxpose.xlu0.b32.cont [2/16] 0.0, 128
      %153 = vxpose.xlu0.b32.cont [3/16] 0.0, 128
      %154 = vxpose.xlu0.b32.cont [4/16] 0.0, 128
      %155 = vxpose.xlu0.b32.cont [5/16] 0.0, 128
      %156 = vxpose.xlu0.b32.cont [6/16] 0.0, 128
      %157 = vxpose.xlu0.b32.cont [7/16] 0.0, 128
      %158 = vxpose.xlu0.b32.cont [8/16] 0.0, 128
      %159 = vxpose.xlu0.b32.cont [9/16] 0.0, 128
      %160 = vxpose.xlu0.b32.cont [10/16] 0.0, 128
      %161 = vxpose.xlu0.b32.cont [11/16] 0.0, 128
      %162 = vxpose.xlu0.b32.cont [12/16] 0.0, 128
      %163 = vxpose.xlu0.b32.cont [13/16] 0.0, 128
      %164 = vxpose.xlu0.b32.cont [14/16] 0.0, 128
      %165 = vxpose.xlu0.b32.cont [15/16] 0.0, 128
      %166 = vxpose.xlu0.b32.end [16/16] 0.0, 128
      %v167 = vpop.trf.xlu0
      %v168 = vpop.trf.xlu0
      %v169 = vpop.trf.xlu0
      %v170 = vpop.trf.xlu0
      %v171 = vpop.trf.xlu0
      %v172 = vpop.trf.xlu0
      %v173 = vpop.trf.xlu0
      %v174 = vpop.trf.xlu0
      %v175 = vpop.trf.xlu0
      %v176 = vpop.trf.xlu0
      %v177 = vpop.trf.xlu0
      %v178 = vpop.trf.xlu0
      %v179 = vpop.trf.xlu0
      %v180 = vpop.trf.xlu0
      %v181 = vpop.trf.xlu0
      %v182 = vpop.trf.xlu0
      %v183 = vld [vmem:[%s1] sm:$0x3]
      %185 = vset.pattern.permute.xlu0 0
      %186 = vperm.xlu0 %185, %v183
      %v187 = vpop.permute.xlu0 %186
      %v189 = vadd.f32 %v167, %v187
      %vm190 = vcmask 58368
      %v191 = vsel %vm190, %v189, -inf
      %192 = vmax.xlane.f32.xlu0 %v191
      %v193 = vpop.xlane.xlu0 %192
      %v194 = vsub.f32 %v189, %v193
      %v195 = vmul.f32 %v194, 1.442695
      %v196 = vpow.pop %v195
      %v197 = vsel %vm190, %v196, 0.0
      %198 = vadd.xlane.f32.xlu0 %v197
      %v199 = vpop.xlane.xlu0 %198
      %v200 = vrcp.pop %v199
      %v201 = vmul.f32 %v196, %v200
      %202 = vst.msk [vmem:[#allocation6] sm:$0x3] %vm190, %v201
    $region21: #{tpu_custom_call.1} parent=1 // pred_fallthru
      _
    // Predicated region
    $region22: #{tpu_custom_call.1} parent=1 // pred_check
      _
    $region23: #{tpu_custom_call.1} parent=1 // pred_check_branch
      %204 = sbr.rel (0) target = $region25
    $region24: #{tpu_custom_call.1} parent=1 // pred_region
      %s206 = ssub.s32 32, 32
      %207 = vsyncadd [#allocation5], %s206
      %s209 = sshll.u32 [#allocation6], 4
      %s210 = int_to_ptr.vmem [resolvable:$true] %s209
      %212 = dma.vmem_to_hbm [thread:$0]  %s210, 32, %s3, [#allocation5]
    $region25: #{tpu_custom_call.1} parent=1 // pred_fallthru
      _
    // Predicated region
    $region26: #{tpu_custom_call.1} parent=1 // pred_check
      _
    $region27: #{tpu_custom_call.1} parent=1 // pred_check_branch
      %214 = sbr.rel (0) target = $region29
    $region28: #{tpu_custom_call.1} parent=1 // pred_region
      %215 = dma.done [#allocation5], 32
    $region29: #{tpu_custom_call.1} parent=1 // pred_fallthru
      _
    %216 = vsyncpa [#allocation4], 1
    %217 = vsyncpa [#allocation5], 1

</llo_original>
